<compile_context>
chip_gen: v7x
topology: tpu7x:2x2x1
jax: 0.10.0
libtpu: 0.0.40
codegen_flags: <defaults>
</compile_context>

<pallas_src>
import functools

import jax
import jax.numpy as jnp
from jax.experimental import pallas as pl
from jax.experimental.pallas import tpu as pltpu


def _pick_tile(h: int) -> int:
    """Largest of 512/256/128 that divides h; else the full dimension."""
    for t in (512, 256, 128):
        if h % t == 0:
            return t
    return h


def _pick_tm(m: int, tn: int, tk: int, in_itemsize: int, out_itemsize: int) -> int:
    """Row tile sized from a ~24 MiB budget for the row-proportional buffers."""
    per_row = (2 * tk * in_itemsize      # x tile, double-buffered
               + 2 * tn * out_itemsize   # output tile, double-buffered
               + 2 * tn * 4)             # f32 accumulator scratch
    cap = (24 << 20) // per_row
    cap = int(min(cap, 1024))
    if m <= cap:
        return m                          # full M => block equals array dim
    return max(8, (cap // 8) * 8)         # keep sublane-aligned row tiles


def _swiglu_kernel(x_ref, wf_ref, bf_ref, o_ref, acc_ref, *, tn):
    k = pl.program_id(2)

    @pl.when(k == 0)
    def _init():
        # Fold the bias into the accumulator init (saves a (tm, 2tn) VPU add
        # per K step vs. adding it repeatedly).
        acc_ref[...] = jnp.broadcast_to(
            bf_ref[...].astype(jnp.float32), acc_ref.shape)

    # One fused MXU matmul per K step: (tm, tk) @ (tk, 2*tn) -> (tm, 2*tn),
    # f32 accumulate regardless of operand dtype (f32 or bf16).
    acc_ref[...] += jnp.dot(x_ref[...], wf_ref[...],
                            preferred_element_type=jnp.float32)

    @pl.when(k == pl.num_programs(2) - 1)
    def _epilogue():
        acc = acc_ref[...]
        w_out = acc[:, :tn]            # first tn lanes of the tile = w(x) + b_w
        v_out = acc[:, tn:]            # last  tn lanes of the tile = v(x) + b_v
        silu = v_out * jax.nn.sigmoid(v_out)      # EUP sigmoid, VPU mul
        gate = jnp.clip(silu, -10.0, 10.0)
        o_ref[...] = (w_out * gate).astype(o_ref.dtype)


def prepare_swiglu_params(w_weight, w_bias, v_weight, v_bias):
    """One-time parameter preparation (hoisted out of the per-call hot path).

    PyTorch layout: w_weight / v_weight are (out_features, in_features); biases
    are (H,).  Returns a fused (H, 2H) weight and (1, 2H) bias laid out so that
    for each output N-tile j of width tn, columns [j*2tn, j*2tn + tn) hold the
    w-columns and [j*2tn + tn, (j+1)*2tn) hold the v-columns of that tile.
    """
    H = w_weight.shape[0]
    tn = _pick_tile(H)
    n_tiles = H // tn

    w_t = w_weight.T.reshape(H, n_tiles, 1, tn)
    v_t = v_weight.T.reshape(H, n_tiles, 1, tn)
    w_fused = jnp.concatenate([w_t, v_t], axis=2).reshape(H, 2 * H)

    bw = w_bias.reshape(n_tiles, 1, tn)
    bv = v_bias.reshape(n_tiles, 1, tn)
    b_fused = jnp.concatenate([bw, bv], axis=1).reshape(1, 2 * H)
    return w_fused, b_fused


def swiglu_pallas(x, w_fused, b_fused):
    """x: (..., H).  w_fused / b_fused come from prepare_swiglu_params."""
    orig_shape = x.shape
    H = orig_shape[-1]
    x2d = x.reshape(-1, H)
    M = x2d.shape[0]

    in_bytes = jnp.dtype(x.dtype).itemsize
    out_bytes = in_bytes
    tn = _pick_tile(H)
    tk = _pick_tile(H)
    tm = _pick_tm(M, tn, tk, in_bytes, out_bytes)

    grid = (pl.cdiv(M, tm), H // tn, H // tk)   # K (reduction) axis last

    # Explicit VMEM budget sized from the actual (double-buffered) tile footprint.
    vmem_bytes = (2 * tm * tk * in_bytes            # x tiles
                  + 2 * tk * 2 * tn * in_bytes      # fused-weight tiles
                  + 2 * 2 * tn * in_bytes           # fused-bias tiles
                  + 2 * tm * tn * out_bytes         # output tiles
                  + tm * 2 * tn * 4)                # f32 accumulator scratch
    vmem_limit = int(min(max(int(vmem_bytes * 1.5), 32 * 1024 * 1024),
                         48 * 1024 * 1024))         # keeps v7x (64 MiB) safe

    # Advisory cost hint for XLA's scheduler around the custom call.
    cost = pl.CostEstimate(
        flops=2 * M * H * (2 * H),                  # fused (M,H)@(H,2H) matmul
        transcendentals=M * H,                      # sigmoid
        bytes_accessed=(M * H * in_bytes            # x
                        + 2 * H * H * in_bytes      # fused weight
                        + 2 * H * in_bytes          # fused bias
                        + M * H * out_bytes))       # output

    kernel = functools.partial(_swiglu_kernel, tn=tn)

    out = pl.pallas_call(
        kernel,
        out_shape=jax.ShapeDtypeStruct((M, H), x.dtype),
        grid_spec=pltpu.PrefetchScalarGridSpec(
            num_scalar_prefetch=0,
            grid=grid,
            in_specs=[
                pl.BlockSpec((tm, tk), lambda i, j, k: (i, k)),       # x rows
                pl.BlockSpec((tk, 2 * tn), lambda i, j, k: (k, j)),   # fused W
                pl.BlockSpec((1, 2 * tn), lambda i, j, k: (0, j)),    # fused b
            ],
            out_specs=pl.BlockSpec((tm, tn), lambda i, j, k: (i, j)),
            scratch_shapes=[pltpu.VMEM((tm, 2 * tn), jnp.float32)],
        ),
        compiler_params=pltpu.CompilerParams(
            dimension_semantics=("parallel", "parallel", "arbitrary"),
            vmem_limit_bytes=vmem_limit,
        ),
        cost_estimate=cost,
    )(x2d, w_fused, b_fused)

    return out.reshape(orig_shape)


def swiglu_reference(x, w_weight, w_bias, v_weight, v_bias):
    """Pure-JAX reference mirroring the PyTorch forward."""
    w_out = x @ w_weight.T + w_bias
    v_out = x @ v_weight.T + v_bias
    silu = v_out * jax.nn.sigmoid(v_out)
    return w_out * jnp.clip(silu, -10.0, 10.0)


def _make_params(key, hidden, scale):
    kww, kbw, kwv, kbv = jax.random.split(key, 4)
    w_weight = jax.random.normal(kww, (hidden, hidden), dtype=jnp.float32) * scale
    w_bias = jax.random.normal(kbw, (hidden,), dtype=jnp.float32) * scale
    v_weight = jax.random.normal(kwv, (hidden, hidden), dtype=jnp.float32) * scale
    v_bias = jax.random.normal(kbv, (hidden,), dtype=jnp.float32) * scale
    return w_weight, w_bias, v_weight, v_bias


if __name__ == "__main__":
    # --- Small demo shape matching the module's intent -----------------------
    batch, seq, hidden = 2, 8, 32

    key = jax.random.PRNGKey(0)
    kx, kp, kx2, kp2 = jax.random.split(key, 4)

    x = jax.random.normal(kx, (batch, seq, hidden), dtype=jnp.float32)
    w_weight, w_bias, v_weight, v_bias = _make_params(kp, hidden, 0.1)

    # One-time parameter prep (transpose + fuse), outside the hot path.
    w_fused, b_fused = prepare_swiglu_params(w_weight, w_bias, v_weight, v_bias)

    # f32 path (matches the PyTorch module's numerics).
    out = jax.block_until_ready(swiglu_pallas(x, w_fused, b_fused))
    ref = swiglu_reference(x, w_weight, w_bias, v_weight, v_bias)
    assert out.shape == (batch, seq, hidden)
    assert jnp.allclose(out, ref, atol=1e-4, rtol=1e-4), "f32 mismatch vs reference"

    # bf16 MXU-operand path (f32 accumulate inside the kernel).
    xb = x.astype(jnp.bfloat16)
    wfb = w_fused.astype(jnp.bfloat16)
    bfb = b_fused.astype(jnp.bfloat16)
    out_bf16 = jax.block_until_ready(swiglu_pallas(xb, wfb, bfb))
    ref_bf16 = swiglu_reference(
        xb.astype(jnp.float32),
        w_weight.astype(jnp.bfloat16).astype(jnp.float32),
        w_bias.astype(jnp.bfloat16).astype(jnp.float32),
        v_weight.astype(jnp.bfloat16).astype(jnp.float32),
        v_bias.astype(jnp.bfloat16).astype(jnp.float32),
    )
    assert out_bf16.shape == (batch, seq, hidden)
    assert jnp.allclose(out_bf16.astype(jnp.float32), ref_bf16,
                        atol=3e-2, rtol=3e-2), "bf16 mismatch vs reference"

    # --- Multi-tile path (K>1, N>1 grid; exercises the accumulator) ----------
    hidden2, rows2 = 384, 272              # tn = tk = 128 -> grid (1, 3, 3)
    x2 = jax.random.normal(kx2, (rows2, hidden2), dtype=jnp.float32)
    w2w, w2b, v2w, v2b = _make_params(kp2, hidden2, 0.05)
    wf2, bf2 = prepare_swiglu_params(w2w, w2b, v2w, v2b)
    out2 = jax.block_until_ready(swiglu_pallas(x2, wf2, bf2))
    ref2 = swiglu_reference(x2, w2w, w2b, v2w, v2b)
    assert out2.shape == (rows2, hidden2)
    assert jnp.allclose(out2, ref2, atol=2e-2, rtol=2e-2), "tiled f32 mismatch"

    print("KERNEL_OK")
</pallas_src>

<mosaic_0001>
module attributes {stable_mosaic.version = 11 : i64} {
  func.func @_swiglu_kernel(%arg0: i32, %arg1: i32, %arg2: i32, %arg3: memref<16x32xf32, #tpu.memory_space<vmem>>, %arg4: memref<32x64xf32, #tpu.memory_space<vmem>>, %arg5: memref<1x64xf32, #tpu.memory_space<vmem>>, %arg6: memref<16x32xf32, #tpu.memory_space<vmem>>, %arg7: memref<16x64xf32, #tpu.memory_space<vmem>>) attributes {dimension_semantics = [#tpu.dimension_semantics<parallel>, #tpu.dimension_semantics<parallel>, #tpu.dimension_semantics<arbitrary>], iteration_bounds = array<i64: 1, 1, 1>, scalar_prefetch = 0 : i64, scratch_operands = 1 : i64, tpu.core_type = #tpu.core_type<tc>, window_params = [{transform_indices = @transform_0, window_bounds = array<i64: 16, 32>}, {transform_indices = @transform_1, window_bounds = array<i64: 32, 64>}, {transform_indices = @transform_2, window_bounds = array<i64: 1, 64>}, {transform_indices = @transform_3, window_bounds = array<i64: 16, 32>}]} {
    %c0_i32 = arith.constant 0 : i32
    %0 = arith.cmpi eq, %arg2, %c0_i32 : i32
    %1 = arith.extui %0 : i1 to i32
    %c0_i32_0 = arith.constant 0 : i32
    %2 = arith.cmpi ne, %1, %c0_i32_0 : i32
    scf.if %2 {
      %c0_10 = arith.constant 0 : index
      %c0_11 = arith.constant 0 : index
      %12 = vector.load %arg5[%c0_10, %c0_11] : memref<1x64xf32, #tpu.memory_space<vmem>>, vector<1x64xf32>
      %13 = vector.shape_cast %12 : vector<1x64xf32> to vector<1x64xf32>
      %14 = vector.broadcast %13 : vector<1x64xf32> to vector<16x64xf32>
      %c0_12 = arith.constant 0 : index
      %c0_13 = arith.constant 0 : index
      %15 = vector.load %arg7[%c0_12, %c0_13] : memref<16x64xf32, #tpu.memory_space<vmem>>, vector<16x64xf32>
      tpu.vector_store %arg7[%c0_12, %c0_13], %14 {strides = array<i32>} : memref<16x64xf32, #tpu.memory_space<vmem>>, vector<16x64xf32>,
    } else {
    }
    %c0 = arith.constant 0 : index
    %c0_1 = arith.constant 0 : index
    %3 = vector.load %arg7[%c0, %c0_1] : memref<16x64xf32, #tpu.memory_space<vmem>>, vector<16x64xf32>
    %c0_2 = arith.constant 0 : index
    %c0_3 = arith.constant 0 : index
    %4 = vector.load %arg3[%c0_2, %c0_3] : memref<16x32xf32, #tpu.memory_space<vmem>>, vector<16x32xf32>
    %c0_4 = arith.constant 0 : index
    %c0_5 = arith.constant 0 : index
    %5 = vector.load %arg4[%c0_4, %c0_5] : memref<32x64xf32, #tpu.memory_space<vmem>>, vector<32x64xf32>
    %cst = arith.constant dense<0.000000e+00> : vector<16x64xf32>
    %6 = tpu.matmul %4, %5, %cst {dimension_numbers = #tpu.dot_dimension_numbers<[1], [0], [0], [1], [0, 0, 1, 1], [], []>} : vector<16x32xf32>, vector<32x64xf32>, vector<16x64xf32> -> vector<16x64xf32>
    %7 = arith.addf %3, %6 : vector<16x64xf32>
    %c0_6 = arith.constant 0 : index
    %c0_7 = arith.constant 0 : index
    %8 = vector.load %arg7[%c0_6, %c0_7] : memref<16x64xf32, #tpu.memory_space<vmem>>, vector<16x64xf32>
    tpu.vector_store %arg7[%c0_6, %c0_7], %7 {strides = array<i32>} : memref<16x64xf32, #tpu.memory_space<vmem>>, vector<16x64xf32>,
    %c0_i32_8 = arith.constant 0 : i32
    %9 = arith.cmpi eq, %arg2, %c0_i32_8 : i32
    %10 = arith.extui %9 : i1 to i32
    %c0_i32_9 = arith.constant 0 : i32
    %11 = arith.cmpi ne, %10, %c0_i32_9 : i32
    scf.if %11 {
      %c0_10 = arith.constant 0 : index
      %c0_11 = arith.constant 0 : index
      %12 = vector.load %arg7[%c0_10, %c0_11] : memref<16x64xf32, #tpu.memory_space<vmem>>, vector<16x64xf32>
      %13 = vector.extract_strided_slice %12 {offsets = [0, 0], sizes = [16, 32], strides = [1, 1]} : vector<16x64xf32> to vector<16x32xf32>
      %14 = vector.extract_strided_slice %12 {offsets = [0, 32], sizes = [16, 32], strides = [1, 1]} : vector<16x64xf32> to vector<16x32xf32>
      %15 = arith.negf %14 : vector<16x32xf32>
      %16 = math.exp %15 : vector<16x32xf32>
      %cst_12 = arith.constant 1.000000e+00 : f32
      %17 = vector.broadcast %cst_12 : f32 to vector<16x32xf32>
      %18 = arith.addf %17, %16 : vector<16x32xf32>
      %19 = arith.divf %17, %18 : vector<16x32xf32>
      %20 = arith.mulf %14, %19 : vector<16x32xf32>
      %cst_13 = arith.constant -1.000000e+01 : f32
      %cst_14 = arith.constant 1.000000e+01 : f32
      %21 = vector.broadcast %cst_13 : f32 to vector<16x32xf32>
      %22 = arith.maximumf %21, %20 : vector<16x32xf32>
      %23 = vector.broadcast %cst_14 : f32 to vector<16x32xf32>
      %24 = arith.minimumf %23, %22 : vector<16x32xf32>
      %25 = arith.mulf %13, %24 : vector<16x32xf32>
      %c0_15 = arith.constant 0 : index
      %c0_16 = arith.constant 0 : index
      %26 = vector.load %arg6[%c0_15, %c0_16] : memref<16x32xf32, #tpu.memory_space<vmem>>, vector<16x32xf32>
      tpu.vector_store %arg6[%c0_15, %c0_16], %25 {strides = array<i32>} : memref<16x32xf32, #tpu.memory_space<vmem>>, vector<16x32xf32>,
    } else {
    }
    return
  }
  func.func @transform_0(%arg0: i32, %arg1: i32, %arg2: i32) -> (i32, i32) {
    %c0_i32 = arith.constant 0 : i32
    return %arg0, %arg2 : i32, i32
  }
  func.func @transform_1(%arg0: i32, %arg1: i32, %arg2: i32) -> (i32, i32) {
    %c0_i32 = arith.constant 0 : i32
    return %arg2, %arg1 : i32, i32
  }
  func.func @transform_2(%arg0: i32, %arg1: i32, %arg2: i32) -> (i32, i32) {
    %c0_i32 = arith.constant 0 : i32
    %c0_i32_0 = arith.constant 0 : i32
    return %c0_i32, %arg1 : i32, i32
  }
  func.func @transform_3(%arg0: i32, %arg1: i32, %arg2: i32) -> (i32, i32) {
    %c0_i32 = arith.constant 0 : i32
    return %arg0, %arg1 : i32, i32
  }
}

</mosaic_0001>

<llo_original>
// kernel: tpu_custom_call.1
$region0: #{tpu_custom_call.1}
  #allocation0 [shape = 'u32[]', space=smem, size = 0x4, offset = 0x4, fixed_abs, tag = 'smem constant byte address 0x4 - core index']
  #allocation1 [shape = 'u32[144,128]{1,0:T(1,128)}', space=vmem, size = 0x12000, scoped, tag = 'internal scratch']
  #allocation2 [shape = 'f32[16,64]{1,0:T(8,128)}', space=vmem, size = 0x2000, scoped, tag = 'scratch operand']
  %s0 = inlined_call_operand.hbm [shape: f32[16,32], index: 0, kind: input, shape index: {}]
  %s1 = inlined_call_operand.hbm [shape: f32[32,64], index: 1, kind: input, shape index: {}]
  %s2 = inlined_call_operand.vmem [shape: f32[1,64], index: 2, kind: input, shape index: {}]
  %s3 = inlined_call_operand.hbm [shape: f32[16,32], index: 3, kind: output, shape index: {}]
  %s4 = sld [smem:[#allocation0]]
  $region38: #{tpu_custom_call.1} parent=0
    _
  %s6 = ssub.s32 1, %s4
  %s7 = scalar_select 0, %s6, %s4
  $region1: #{tpu_custom_call.1} parent=0
    #allocation3 [shape = 'u8[8192]{0}', space=vmem, size = 0x2000, scoped, tag = 'input window, operand 0, single buffered']
    #allocation4 [shape = 's32[1]{0}', space=sflag, size = 0x4, scoped, tag = 'scoped memory for tpu_custom_call.1']
    #allocation5 [shape = 's32[1]{0}', space=sflag, size = 0x4, scoped, tag = 'scoped memory for tpu_custom_call.1']
    #allocation6 [shape = 'u8[16384]{0}', space=vmem, size = 0x4000, scoped, tag = 'input window, operand 1, single buffered']
    #allocation7 [shape = 's32[1]{0}', space=sflag, size = 0x4, scoped, tag = 'scoped memory for tpu_custom_call.1']
    #allocation8 [shape = 'u8[8192]{0}', space=vmem, size = 0x2000, scoped, tag = 'output window, operand 0, single buffered']
    %8 = vsyncpa [#allocation4], 0
    %9 = vsyncpa [#allocation7], 0
    %10 = vsyncpa [#allocation5], 0
    // Predicated region
    $region2: #{tpu_custom_call.1} parent=1 // pred_check
      _
    $region3: #{tpu_custom_call.1} parent=1 // pred_check_branch
      %12 = sbr.rel (0) target = $region5
    $region4: #{tpu_custom_call.1} parent=1 // pred_region
      %s14 = ssub.s32 256, 256
      %15 = vsyncadd [#allocation4], %s14
      %s16 = sshll.u32 [#allocation3], 4
      %s17 = int_to_ptr.vmem [resolvable:$true] %s16
      %22 = dma.hbm_to_vmem [thread:$0]  %s0, 256, %s17, [#allocation4], 128, 128, 8
    $region5: #{tpu_custom_call.1} parent=1 // pred_fallthru
      _
    // Predicated region
    $region6: #{tpu_custom_call.1} parent=1 // pred_check
      _
    $region7: #{tpu_custom_call.1} parent=1 // pred_check_branch
      %24 = sbr.rel (0) target = $region9
    $region8: #{tpu_custom_call.1} parent=1 // pred_region
      %s26 = ssub.s32 512, 512
      %27 = vsyncadd [#allocation7], %s26
      %s28 = sshll.u32 [#allocation6], 4
      %s29 = int_to_ptr.vmem [resolvable:$true] %s28
      %34 = dma.hbm_to_vmem [thread:$0]  %s1, 512, %s29, [#allocation7], 128, 128, 8
    $region9: #{tpu_custom_call.1} parent=1 // pred_fallthru
      _
    // Predicated region
    $region10: #{tpu_custom_call.1} parent=1 // pred_check
      _
    $region11: #{tpu_custom_call.1} parent=1 // pred_check_branch
      %36 = sbr.rel (0) target = $region13
    $region12: #{tpu_custom_call.1} parent=1 // pred_region
      _
    $region13: #{tpu_custom_call.1} parent=1 // pred_fallthru
      _
    // Predicated region
    $region14: #{tpu_custom_call.1} parent=1 // pred_check
      _
    $region15: #{tpu_custom_call.1} parent=1 // pred_check_branch
      %38 = sbr.rel (0) target = $region17
    $region16: #{tpu_custom_call.1} parent=1 // pred_region
      %39 = dma.done [#allocation4], 256
    $region17: #{tpu_custom_call.1} parent=1 // pred_fallthru
      _
    // Predicated region
    $region18: #{tpu_custom_call.1} parent=1 // pred_check
      _
    $region19: #{tpu_custom_call.1} parent=1 // pred_check_branch
      %41 = sbr.rel (0) target = $region21
    $region20: #{tpu_custom_call.1} parent=1 // pred_region
      %42 = dma.done [#allocation7], 512
    $region21: #{tpu_custom_call.1} parent=1 // pred_fallthru
      _
    %p43 = scmp.eq.s32.totalorder 0, 0
    // Predicated region
    $region22: #{tpu_custom_call.1} parent=1 // pred_check
      %p44 = pneg %p43
    $region23: #{tpu_custom_call.1} parent=1 // pred_check_branch
      %46 = sbr.rel (%p44) target = $region25
    $region24: #{tpu_custom_call.1} parent=1 // pred_region
      %v47 = vld [vmem:[%s2] sm:$0x1]
      %v49 = vlaneseq
      %v50 = vshrl.u32 %v49, 7
      %v51 = vsub.s32 0, %v50
      %v52 = vrot.slane %v47, %v51
      %vm54 = vcmask 523264
      %55 = vst.msk [vmem:[#allocation2] sm:$0xff] %vm54, %v52
      %56 = vst.msk [vmem:[#allocation2 + $0x8] sm:$0xff] %vm54, %v52
    $region25: #{tpu_custom_call.1} parent=1 // pred_fallthru
      _
    %v57 = vld [vmem:[#allocation2] sm:$0xff]
    %v58 = vld [vmem:[#allocation2 + $0x8] sm:$0xff]
    %v59 = vld [vmem:[#allocation3] sm:$0xff]
    %v60 = vld [vmem:[#allocation3 + $0x8] sm:$0xff]
    %v61 = vld [vmem:[#allocation6] sm:$0xff]
    %v62 = vld [vmem:[#allocation6 + $0x8] sm:$0xff]
    %v63 = vld [vmem:[#allocation6 + $0x10] sm:$0xff]
    %v64 = vld [vmem:[#allocation6 + $0x18] sm:$0xff]
    %vm65 = vcmask 261120
    %v67 = vsel %vm65, %v59, 0
    %v70 = vsel %vm65, %v60, 0
    %72 = vmatprep.subr.mxu0 0.0
    %73 = vmatpush1.msra.mxu0 %v61
    %74 = vmatprep.subr.mxu0 0.0
    %75 = vmatpush1.msra.mxu0 %v62
    %76 = vmatprep.subr.mxu0 0.0
    %77 = vmatpush1.msra.mxu0 %v63
    %78 = vmatprep.subr.mxu0 0.0
    %79 = vmatpush1.msra.mxu0 %v64
    %80 = vmatprep.subr.mxu0 0.0
    %81 = vmatpush1.msra.mxu0 0.0
    %82 = vmatprep.subr.mxu0 0.0
    %83 = vmatpush1.msra.mxu0 0.0
    %84 = vmatprep.subr.mxu0 0.0
    %85 = vmatpush1.msra.mxu0 0.0
    %86 = vmatprep.subr.mxu0 0.0
    %87 = vmatpush1.msra.mxu0 0.0
    %88 = vmatprep.subr.mxu0 0.0
    %89 = vmatpush1.msra.mxu0 0.0
    %90 = vmatprep.subr.mxu0 0.0
    %91 = vmatpush1.msra.mxu0 0.0
    %92 = vmatprep.subr.mxu0 0.0
    %93 = vmatpush1.msra.mxu0 0.0
    %94 = vmatprep.subr.mxu0 0.0
    %95 = vmatpush1.msra.mxu0 0.0
    %96 = vmatprep.subr.mxu0 0.0
    %97 = vmatpush1.msra.mxu0 0.0
    %98 = vmatprep.subr.mxu0 0.0
    %99 = vmatpush1.msra.mxu0 0.0
    %100 = vmatprep.subr.mxu0 0.0
    %101 = vmatpush1.msra.mxu0 0.0
    %102 = vmatprep.subr.mxu0 0.0
    %103 = vmatpush1.msra.mxu0 0.0
    %104 = vmatprep.subr.mxu0 0.0
    %105 = vmatpush1.msra.mxu0 0.0
    %106 = vmatprep.subr.mxu0 0.0
    %107 = vmatpush1.msra.mxu0 0.0
    %108 = vmatprep.subr.mxu0 0.0
    %109 = vmatpush1.msra.mxu0 0.0
    %110 = vmatprep.subr.mxu0 0.0
    %111 = vmatpush1.msra.mxu0 0.0
    %112 = vmatprep.subr.mxu0 0.0
    %113 = vmatpush1.msra.mxu0 0.0
    %114 = vmatprep.subr.mxu0 0.0
    %115 = vmatpush1.msra.mxu0 0.0
    %116 = vmatprep.subr.mxu0 0.0
    %117 = vmatpush1.msra.mxu0 0.0
    %118 = vmatprep.subr.mxu0 0.0
    %119 = vmatpush1.msra.mxu0 0.0
    %120 = vmatprep.subr.mxu0 0.0
    %121 = vmatpush1.msra.mxu0 0.0
    %122 = vmatprep.subr.mxu0 0.0
    %123 = vmatpush1.msra.mxu0 0.0
    %124 = vmatprep.subr.mxu0 0.0
    %125 = vmatpush1.msra.mxu0 0.0
    %126 = vmatprep.subr.mxu0 0.0
    %127 = vmatpush1.msra.mxu0 0.0
    %128 = vmatprep.subr.mxu0 0.0
    %129 = vmatpush1.msra.mxu0 0.0
    %130 = vmatprep.subr.mxu0 0.0
    %131 = vmatpush1.msra.mxu0 0.0
    %132 = vmatprep.subr.mxu0 0.0
    %133 = vmatpush1.msra.mxu0 0.0
    %134 = vmatprep.subr.mxu0 0.0
    %135 = vmatpush1.msra.mxu0 0.0
    %136 = vmatprep.mubr.f32.mxu0 0.0
    %137 = vmatmul.mubr.f32.gmra.mrb[0].mxu0 %v67
    %v138 = vpop.f32.mrb[0].mxu0
    %v139 = vadd.f32 0.0, %v138
    %v140 = vpop.f32.mrb[0].mxu0
    %141 = vmatprep.mubr.f32.mxu0 0.0
    %142 = vmatmul.mubr.f32.gmra.mrb[0].mxu0 %v70
    %v143 = vpop.f32.mrb[0].mxu0
    %v144 = vadd.f32 0.0, %v143
    %v145 = vpop.f32.mrb[0].mxu0
    %146 = vdwg.mxu0
    %v147 = vadd.f32 %v57, %v139
    %v148 = vadd.f32 %v58, %v144
    %vm149 = vcmask 523264
    %150 = vst.msk [vmem:[#allocation2] sm:$0xff] %vm149, %v147
    %151 = vst.msk [vmem:[#allocation2 + $0x8] sm:$0xff] %vm149, %v148
    // Predicated region
    $region26: #{tpu_custom_call.1} parent=1 // pred_check
      %p152 = pneg %p43
    $region27: #{tpu_custom_call.1} parent=1 // pred_check_branch
      %154 = sbr.rel (%p152) target = $region29
    $region28: #{tpu_custom_call.1} parent=1 // pred_region
      %v155 = vld [vmem:[#allocation2] sm:$0xff]
      %v156 = vld [vmem:[#allocation2 + $0x8] sm:$0xff]
      %v157 = vxor.u32 %v155, 2147483648
      %v158 = vxor.u32 %v156, 2147483648
      %v159 = vmul.f32 %v157, 1.442695
      %v160 = vpow.pop %v159
      %v161 = vmul.f32 %v158, 1.442695
      %v162 = vpow.pop %v161
      %v163 = vadd.f32 %v160, 1.0
      %v164 = vadd.f32 %v162, 1.0
      %v165 = vrcp.pop %v163
      %v166 = vmul.f32 1.0, %v165
      %v167 = vrcp.pop %v164
      %v168 = vmul.f32 1.0, %v167
      %v169 = vmul.f32 %v155, %v166
      %v170 = vmul.f32 %v156, %v168
      %v171 = vmax.f32 %v169, -10.0
      %v172 = vmax.f32 %v170, -10.0
      %v173 = vmin.f32 %v171, 10.0
      %v174 = vmin.f32 %v172, 10.0
      %177 = vrot.lane.b32.xlu0 %v173, 96
      %v178 = vpop.permute.xlu0 %177
      %179 = vrot.lane.b32.xlu0 %v174, 96
      %v180 = vpop.permute.xlu0 %179
      %v183 = vmul.f32 %v155, %v178
      %v184 = vmul.f32 %v156, %v180
      %185 = vst.msk [vmem:[#allocation8] sm:$0xff] %vm65, %v183
      %186 = vst.msk [vmem:[#allocation8 + $0x8] sm:$0xff] %vm65, %v184
    $region29: #{tpu_custom_call.1} parent=1 // pred_fallthru
      _
    // Predicated region
    $region30: #{tpu_custom_call.1} parent=1 // pred_check
      _
    $region31: #{tpu_custom_call.1} parent=1 // pred_check_branch
      %188 = sbr.rel (0) target = $region33
    $region32: #{tpu_custom_call.1} parent=1 // pred_region
      %s190 = ssub.s32 256, 256
      %191 = vsyncadd [#allocation5], %s190
      %s192 = sshll.u32 [#allocation8], 4
      %s193 = int_to_ptr.vmem [resolvable:$true] %s192
      %198 = dma.vmem_to_hbm [thread:$0]  %s193, 256, %s3, [#allocation5], 128, 128, 8
    $region33: #{tpu_custom_call.1} parent=1 // pred_fallthru
      _
    // Predicated region
    $region34: #{tpu_custom_call.1} parent=1 // pred_check
      _
    $region35: #{tpu_custom_call.1} parent=1 // pred_check_branch
      %200 = sbr.rel (0) target = $region37
    $region36: #{tpu_custom_call.1} parent=1 // pred_region
      %201 = dma.done [#allocation5], 256
    $region37: #{tpu_custom_call.1} parent=1 // pred_fallthru
      _
    %202 = vsyncpa [#allocation4], 1
    %203 = vsyncpa [#allocation7], 1
    %204 = vsyncpa [#allocation5], 1

</llo_original>
